<compile_context>
chip_gen: v6e
topology: v6e:2x2x1
jax: 0.10.0
libtpu: 0.0.40
codegen_flags: <defaults>
</compile_context>

<pallas_src>
import functools
import math

import jax
import jax.numpy as jnp
from jax.experimental import pallas as pl
from jax.experimental.pallas import tpu as pltpu

EMB_DIM = 256          # config.emb_dim default
NUM_HEADS = 4          # config.num_heads default
HEAD_DIM = EMB_DIM // NUM_HEADS

_LANE = 128
_VMEM_LIMIT_BYTES = 32 * 1024 * 1024     # explicit scoped-VMEM cap, safe on v5e/v6e/v7x
_DST_TILE_CANDIDATES = (256, 128)        # dst rows/tile (mult of 32: int8 adj sublanes)
_SRC_TILE_CANDIDATES = (512, 256, 128)   # src cols/tile (mult of 128: lane-dense)
_PROJ_TILE_CANDIDATES = (512, 256, 128)  # node rows/tile for the projection pass


def _round_up(n, m):
    return ((n + m - 1) // m) * m


def _pick_tile(n, candidates):
    # n is always a multiple of 128, so the 128 candidate always divides.
    for c in candidates:
        if n % c == 0:
            return c
    return _LANE


# --------------------------- in-kernel helpers ---------------------------

def _gelu_exact(x):
    # Exact (erf-based) GELU.  erf via Abramowitz & Stegun 7.1.26 (|err| < 1.5e-7),
    # built from exp / mul / where only, so it lowers cleanly and runs on EUP/VPU
    # slots that are idle under the MXU work.
    z = x * 0.7071067811865476
    a = jnp.abs(z)
    t = 1.0 / (1.0 + 0.3275911 * a)
    poly = t * (0.254829592 + t * (-0.284496736 + t * (1.421413741
               + t * (-1.453152027 + t * 1.061405429))))
    erf_abs = 1.0 - poly * jnp.exp(-a * a)
    erf = jnp.where(z < 0.0, -erf_abs, erf_abs)
    return 0.5 * x * (1.0 + erf)


# -------------------- stage A: source K^T / V projection ------------------

def _src_project_kernel(x_ref, w_ref, b_ref, kt_ref, v_ref):
    # One fused [TN,256]@[256,512] matmul; relation transforms (and p_rel/sqrt(D))
    # are already folded into w/b.  K is written pre-transposed for stage B.
    kv = jnp.dot(x_ref[...].astype(jnp.bfloat16), w_ref[...],
                 preferred_element_type=jnp.float32) + b_ref[...]
    kt_ref[...] = kv[:, :EMB_DIM].T.astype(jnp.bfloat16)
    v_ref[...] = kv[:, EMB_DIM:].astype(jnp.bfloat16)


def _project_src(x, w_kv, b_kv):
    n = x.shape[0]
    tn = _pick_tile(n, _PROJ_TILE_CANDIDATES)
    return pl.pallas_call(
        _src_project_kernel,
        out_shape=(jax.ShapeDtypeStruct((EMB_DIM, n), jnp.bfloat16),   # K^T
                   jax.ShapeDtypeStruct((n, EMB_DIM), jnp.bfloat16)),  # V
        grid=(n // tn,),
        in_specs=[pl.BlockSpec((tn, EMB_DIM), lambda i: (i, 0)),
                  pl.BlockSpec((EMB_DIM, 2 * EMB_DIM), lambda i: (0, 0)),
                  pl.BlockSpec((1, 2 * EMB_DIM), lambda i: (0, 0))],
        out_specs=(pl.BlockSpec((EMB_DIM, tn), lambda i: (0, i)),
                   pl.BlockSpec((tn, EMB_DIM), lambda i: (i, 0))),
        compiler_params=pltpu.CompilerParams(
            dimension_semantics=("parallel",),
            vmem_limit_bytes=_VMEM_LIMIT_BYTES),
    )(x, w_kv, b_kv)


# ------------- stage B: flash attention + GELU + out-proj + skip ----------

def _attn_finalize_kernel(gate_ref, x_ref, kt_ref, v_ref, adj_ref,
                          qw_ref, qb_ref, outw_ref, outb_ref,
                          o_ref, q_sc, m_sc, l_sc, acc_sc, *, apply_out_gelu):
    H, D = NUM_HEADS, HEAD_DIM
    j = pl.program_id(1)

    @pl.when(j == 0)
    def _init():
        # Q projection for this dst tile, computed once and reused across src tiles.
        q = jnp.dot(x_ref[...].astype(jnp.bfloat16), qw_ref[...],
                    preferred_element_type=jnp.float32) + qb_ref[...]
        q_sc[...] = q.astype(jnp.bfloat16)
        m_sc[...] = jnp.full_like(m_sc, -1e30)
        l_sc[...] = jnp.zeros_like(l_sc)
        acc_sc[...] = jnp.zeros_like(acc_sc)

    mask = adj_ref[...].astype(jnp.int32) > 0          # [TD, TS] from int8 adjacency
    q = q_sc[...]                                      # [TD, 256] bf16
    kt = kt_ref[...]                                   # [256, TS] bf16 (pre-transposed)
    v = v_ref[...]                                     # [TS, 256] bf16

    for h in range(H):                                 # static unroll, H = 4
        sl = slice(h * D, (h + 1) * D)
        s = jnp.dot(q[:, sl], kt[sl, :], preferred_element_type=jnp.float32)  # [TD,TS]
        s = jnp.where(mask, s, -1e30)
        m_prev = m_sc[:, h:h + 1]
        m_new = jnp.maximum(m_prev, jnp.max(s, axis=-1, keepdims=True))
        p = jnp.where(mask, jnp.exp(s - m_new), 0.0)
        corr = jnp.exp(m_prev - m_new)
        l_sc[:, h:h + 1] = corr * l_sc[:, h:h + 1] + jnp.sum(p, axis=-1, keepdims=True)
        acc_sc[:, sl] = corr * acc_sc[:, sl] + jnp.dot(
            p.astype(jnp.bfloat16), v[:, sl], preferred_element_type=jnp.float32)
        m_sc[:, h:h + 1] = m_new

    @pl.when(j == pl.num_programs(1) - 1)
    def _finalize():
        for h in range(H):
            sl = slice(h * D, (h + 1) * D)
            inv = pl.reciprocal(jnp.maximum(l_sc[:, h:h + 1], 1e-30), approx=True)
            acc_sc[:, sl] = acc_sc[:, sl] * inv        # no-edge rows stay exactly 0
        g = _gelu_exact(acc_sc[...])                   # exact GELU on the messages
        lin = jnp.dot(g.astype(jnp.bfloat16), outw_ref[...],
                      preferred_element_type=jnp.float32) + outb_ref[...]
        gate = gate_ref[0]                             # sigmoid(skip), host-precomputed
        y = gate * lin + (1.0 - gate) * x_ref[...]     # gated skip
        if apply_out_gelu:                             # fused inter-layer GELU (conv1)
            y = _gelu_exact(y)
        o_ref[...] = y


def _attend_finalize(x_dst, kt_src, v_src, adj, qw, qb, outw, outb, gate,
                     apply_out_gelu):
    nd = x_dst.shape[0]
    ns = v_src.shape[0]
    td = _pick_tile(nd, _DST_TILE_CANDIDATES)
    ts = _pick_tile(ns, _SRC_TILE_CANDIDATES)
    kernel = functools.partial(_attn_finalize_kernel, apply_out_gelu=apply_out_gelu)
    return pl.pallas_call(
        kernel,
        out_shape=jax.ShapeDtypeStruct((nd, EMB_DIM), jnp.float32),
        grid=(nd // td, ns // ts),
        in_specs=[
            pl.BlockSpec(memory_space=pltpu.MemorySpace.SMEM),       # gate, shape (1,)
            pl.BlockSpec((td, EMB_DIM), lambda i, j: (i, 0)),        # x_dst (skip + Q)
            pl.BlockSpec((EMB_DIM, ts), lambda i, j: (0, j)),        # K^T bf16
            pl.BlockSpec((ts, EMB_DIM), lambda i, j: (j, 0)),        # V bf16
            pl.BlockSpec((td, ts), lambda i, j: (i, j)),             # adjacency int8
            pl.BlockSpec((EMB_DIM, EMB_DIM), lambda i, j: (0, 0)),   # Wq (resident)
            pl.BlockSpec((1, EMB_DIM), lambda i, j: (0, 0)),         # bq
            pl.BlockSpec((EMB_DIM, EMB_DIM), lambda i, j: (0, 0)),   # Wout (resident)
            pl.BlockSpec((1, EMB_DIM), lambda i, j: (0, 0)),         # bout
        ],
        out_specs=pl.BlockSpec((td, EMB_DIM), lambda i, j: (i, 0)),
        scratch_shapes=[
            pltpu.VMEM((td, EMB_DIM), jnp.bfloat16),    # Q for this dst tile
            pltpu.VMEM((td, NUM_HEADS), jnp.float32),   # online-softmax m
            pltpu.VMEM((td, NUM_HEADS), jnp.float32),   # online-softmax l
            pltpu.VMEM((td, EMB_DIM), jnp.float32),     # message accumulator
        ],
        compiler_params=pltpu.CompilerParams(
            dimension_semantics=("parallel", "arbitrary"),
            vmem_limit_bytes=_VMEM_LIMIT_BYTES),
    )(gate, x_dst, kt_src, v_src, adj, qw, qb, outw, outb)


# ------------------------------ HGT layer ---------------------------------

def hgt_layer(xu, xp, adj_pu, adj_up, lp, apply_out_gelu):
    # Source projections (relation transforms + p_rel/sqrt(D) folded into weights).
    ktT_u, v_u = _project_src(xu, lp['kvw_u'], lp['kvb_u'])   # user as source
    ktT_p, v_p = _project_src(xp, lp['kvw_p'], lp['kvb_p'])   # product as source
    # dst = product (src = user), then dst = user (src = product).
    xp_new = _attend_finalize(xp, ktT_u, v_u, adj_pu, lp['qw_p'], lp['qb_p'],
                              lp['outw_p'], lp['outb_p'], lp['gate_p'],
                              apply_out_gelu)
    xu_new = _attend_finalize(xu, ktT_p, v_p, adj_up, lp['qw_u'], lp['qb_u'],
                              lp['outw_u'], lp['outb_u'], lp['gate_u'],
                              apply_out_gelu)
    return xu_new, xp_new


def multimodal_gnn_forward(params, x_dict, adj, metadata):
    node_types, edge_types = metadata
    xu = params['user_emb'][x_dict['user']].astype(jnp.float32)   # nn.Embedding gather
    xp = x_dict['product'].astype(jnp.float32)
    nu, npr = xu.shape[0], xp.shape[0]
    nu_pad, np_pad = _round_up(nu, _LANE), _round_up(npr, _LANE)

    # Pad once to lane-friendly sizes; int8 adjacency is padded with zeros (no edges)
    # and reused by both layers.  Padded rows are sliced off at the end.
    xu_p = jnp.pad(xu, ((0, nu_pad - nu), (0, 0)))
    xp_p = jnp.pad(xp, ((0, np_pad - npr), (0, 0)))
    adj_pu = jnp.pad(adj[edge_types[0]].astype(jnp.int8),
                     ((0, np_pad - npr), (0, nu_pad - nu)))    # [dst=product, src=user]
    adj_up = jnp.pad(adj[edge_types[1]].astype(jnp.int8),
                     ((0, nu_pad - nu), (0, np_pad - npr)))    # [dst=user, src=product]

    # conv1 (inter-layer GELU fused into the kernel; dropout eval == identity), conv2
    xu_p, xp_p = hgt_layer(xu_p, xp_p, adj_pu, adj_up, params['conv1'], True)
    xu_p, xp_p = hgt_layer(xu_p, xp_p, adj_pu, adj_up, params['conv2'], False)
    return {'user': xu_p[:nu], 'product': xp_p[:npr]}


# --------------------------- parameter handling ---------------------------

def init_hgt_params(key, metadata, emb=EMB_DIM, heads=NUM_HEADS):
    node_types, edge_types = metadata
    d = emb // heads
    p = {'kqv_w': {}, 'kqv_b': {}, 'out_w': {}, 'out_b': {}, 'skip': {},
         'k_rel': {}, 'v_rel': {}, 'p_rel': {}}
    for nt in node_types:
        key, k1, k2, k3, k4 = jax.random.split(key, 5)
        p['kqv_w'][nt] = 0.02 * jax.random.normal(k1, (emb, 3 * emb), jnp.float32)
        p['kqv_b'][nt] = 0.02 * jax.random.normal(k2, (3 * emb,), jnp.float32)
        p['out_w'][nt] = 0.02 * jax.random.normal(k3, (emb, emb), jnp.float32)
        p['out_b'][nt] = 0.02 * jax.random.normal(k4, (emb,), jnp.float32)
        p['skip'][nt] = jnp.ones((), jnp.float32)             # PyG init: ones
    for e in edge_types:
        ekey = '__'.join(e)
        key, k1, k2 = jax.random.split(key, 3)
        p['k_rel'][ekey] = 0.02 * jax.random.normal(k1, (heads, d, d), jnp.float32)
        p['v_rel'][ekey] = 0.02 * jax.random.normal(k2, (heads, d, d), jnp.float32)
        p['p_rel'][ekey] = jnp.ones((heads,), jnp.float32)    # PyG init: ones
    return key, p


def _block_diag(rel):          # rel: [H, D, D] -> block-diagonal [H*D, H*D]
    h, d, _ = rel.shape
    eye = jnp.eye(h, dtype=rel.dtype)
    return (eye[:, None, :, None] * rel[:, :, None, :]).reshape(h * d, h * d)


def prep_hgt_layer(p, metadata):
    """Fold relation transforms + p_rel/sqrt(D) into the source K/V projection,
    precompute sigmoid(skip), pre-cast MXU weights to bf16."""
    _, edge_types = metadata
    e_pu = '__'.join(edge_types[0])   # ('user','buys','product'):      src = user
    e_up = '__'.join(edge_types[1])   # ('product','rev_buys','user'):  src = product
    F = EMB_DIM

    def split_kqv(nt):                # PyG split order: k, q, v
        w, b = p['kqv_w'][nt], p['kqv_b'][nt]
        return (w[:, :F], w[:, F:2 * F], w[:, 2 * F:]), (b[:F], b[F:2 * F], b[2 * F:])

    def src_fold(nt, ekey):
        (wk, _, wv), (bk, _, bv) = split_kqv(nt)
        scale = (p['p_rel'][ekey] / math.sqrt(HEAD_DIM))[:, None, None]
        krel = _block_diag(p['k_rel'][ekey] * scale)
        vrel = _block_diag(p['v_rel'][ekey])
        wkv = jnp.concatenate([wk @ krel, wv @ vrel], axis=1).astype(jnp.bfloat16)
        bkv = jnp.concatenate([bk @ krel, bv @ vrel]).reshape(1, -1).astype(jnp.float32)
        return wkv, bkv

    def dst_side(nt):
        (_, wq, _), (_, bq, _) = split_kqv(nt)
        return (wq.astype(jnp.bfloat16), bq.reshape(1, -1).astype(jnp.float32),
                p['out_w'][nt].astype(jnp.bfloat16),
                p['out_b'][nt].reshape(1, -1).astype(jnp.float32),
                jax.nn.sigmoid(p['skip'][nt]).reshape(1).astype(jnp.float32))

    kvw_u, kvb_u = src_fold('user', e_pu)
    kvw_p, kvb_p = src_fold('product', e_up)
    qw_u, qb_u, outw_u, outb_u, gate_u = dst_side('user')
    qw_p, qb_p, outw_p, outb_p, gate_p = dst_side('product')
    return dict(kvw_u=kvw_u, kvb_u=kvb_u, kvw_p=kvw_p, kvb_p=kvb_p,
                qw_u=qw_u, qb_u=qb_u, qw_p=qw_p, qb_p=qb_p,
                outw_u=outw_u, outb_u=outb_u, outw_p=outw_p, outb_p=outb_p,
                gate_u=gate_u, gate_p=gate_p)


# --------------------------------- main -----------------------------------

if __name__ == "__main__":
    metadata = (['user', 'product'],
                [('user', 'buys', 'product'), ('product', 'rev_buys', 'user')])

    NUM_USERS = 32
    N_USER_NODES, N_PROD_NODES = 8, 8

    key = jax.random.PRNGKey(0)
    key, k_emb = jax.random.split(key)
    user_emb = 0.1 * jax.random.normal(k_emb, (NUM_USERS, EMB_DIM), jnp.float32)
    key, raw1 = init_hgt_params(key, metadata)
    key, raw2 = init_hgt_params(key, metadata)

    params = {
        'user_emb': user_emb,
        'conv1': prep_hgt_layer(raw1, metadata),
        'conv2': prep_hgt_layer(raw2, metadata),
    }

    key, k_ids, k_prod, k_adj = jax.random.split(key, 4)
    user_ids = jax.random.randint(k_ids, (N_USER_NODES,), 0, NUM_USERS)
    prod_feat = jax.random.normal(k_prod, (N_PROD_NODES, EMB_DIM), jnp.float32)

    # adjacency masks: adj[dst, src] = 1 if edge src -> dst exists (int8)
    adj_buys = (jax.random.uniform(k_adj, (N_PROD_NODES, N_USER_NODES)) < 0.4
                ).astype(jnp.int8)
    adj = {('user', 'buys', 'product'): adj_buys,
           ('product', 'rev_buys', 'user'): adj_buys.T}

    x_dict = {'user': user_ids, 'product': prod_feat}

    out = multimodal_gnn_forward(params, x_dict, adj, metadata)
    jax.block_until_ready(out)

    assert out['user'].shape == (N_USER_NODES, EMB_DIM)
    assert out['product'].shape == (N_PROD_NODES, EMB_DIM)
    assert all(bool(jnp.all(jnp.isfinite(v))) for v in out.values())
    print("KERNEL_OK")
</pallas_src>

<mosaic_0001>
module attributes {stable_mosaic.version = 11 : i64} {
  func.func @_src_project_kernel(%arg0: i32, %arg1: memref<128x256xf32, #tpu.memory_space<vmem>>, %arg2: memref<256x512xbf16, #tpu.memory_space<vmem>>, %arg3: memref<1x512xf32, #tpu.memory_space<vmem>>, %arg4: memref<256x128xbf16, #tpu.memory_space<vmem>>, %arg5: memref<128x256xbf16, #tpu.memory_space<vmem>>) attributes {dimension_semantics = [#tpu.dimension_semantics<parallel>], iteration_bounds = array<i64: 1>, scalar_prefetch = 0 : i64, scratch_operands = 0 : i64, tpu.core_type = #tpu.core_type<tc>, window_params = [{transform_indices = @transform_0, window_bounds = array<i64: 128, 256>}, {pipeline_mode = #tpu.pipeline_mode<synchronous>, transform_indices = @transform_1, window_bounds = array<i64: 256, 512>}, {pipeline_mode = #tpu.pipeline_mode<synchronous>, transform_indices = @transform_2, window_bounds = array<i64: 1, 512>}, {transform_indices = @transform_3, window_bounds = array<i64: 256, 128>}, {transform_indices = @transform_4, window_bounds = array<i64: 128, 256>}]} {
    %c0 = arith.constant 0 : index
    %c0_0 = arith.constant 0 : index
    %0 = vector.load %arg1[%c0, %c0_0] : memref<128x256xf32, #tpu.memory_space<vmem>>, vector<128x256xf32>
    %1 = arith.truncf %0 : vector<128x256xf32> to vector<128x256xbf16>
    %c0_1 = arith.constant 0 : index
    %c0_2 = arith.constant 0 : index
    %2 = vector.load %arg2[%c0_1, %c0_2] : memref<256x512xbf16, #tpu.memory_space<vmem>>, vector<256x512xbf16>
    %cst = arith.constant dense<0.000000e+00> : vector<128x512xf32>
    %3 = tpu.matmul %1, %2, %cst {dimension_numbers = #tpu.dot_dimension_numbers<[1], [0], [0], [1], [0, 0, 1, 1], [], []>} : vector<128x256xbf16>, vector<256x512xbf16>, vector<128x512xf32> -> vector<128x512xf32>
    %c0_3 = arith.constant 0 : index
    %c0_4 = arith.constant 0 : index
    %4 = vector.load %arg3[%c0_3, %c0_4] : memref<1x512xf32, #tpu.memory_space<vmem>>, vector<1x512xf32>
    %5 = vector.broadcast %4 : vector<1x512xf32> to vector<128x512xf32>
    %6 = arith.addf %3, %5 : vector<128x512xf32>
    %7 = vector.extract_strided_slice %6 {offsets = [0, 0], sizes = [128, 256], strides = [1, 1]} : vector<128x512xf32> to vector<128x256xf32>
    %8 = tpu.transpose %7, [1, 0] : vector<128x256xf32> -> vector<256x128xf32>
    %9 = arith.truncf %8 : vector<256x128xf32> to vector<256x128xbf16>
    %c0_5 = arith.constant 0 : index
    %c0_6 = arith.constant 0 : index
    %10 = vector.load %arg4[%c0_5, %c0_6] : memref<256x128xbf16, #tpu.memory_space<vmem>>, vector<256x128xbf16>
    tpu.vector_store %arg4[%c0_5, %c0_6], %9 {strides = array<i32>} : memref<256x128xbf16, #tpu.memory_space<vmem>>, vector<256x128xbf16>,
    %11 = vector.extract_strided_slice %6 {offsets = [0, 256], sizes = [128, 256], strides = [1, 1]} : vector<128x512xf32> to vector<128x256xf32>
    %12 = arith.truncf %11 : vector<128x256xf32> to vector<128x256xbf16>
    %c0_7 = arith.constant 0 : index
    %c0_8 = arith.constant 0 : index
    %13 = vector.load %arg5[%c0_7, %c0_8] : memref<128x256xbf16, #tpu.memory_space<vmem>>, vector<128x256xbf16>
    tpu.vector_store %arg5[%c0_7, %c0_8], %12 {strides = array<i32>} : memref<128x256xbf16, #tpu.memory_space<vmem>>, vector<128x256xbf16>,
    return
  }
  func.func @transform_0(%arg0: i32) -> (i32, i32) {
    %c0_i32 = arith.constant 0 : i32
    %c0_i32_0 = arith.constant 0 : i32
    return %arg0, %c0_i32 : i32, i32
  }
  func.func @transform_1(%arg0: i32) -> (i32, i32) {
    %c0_i32 = arith.constant 0 : i32
    %c0_i32_0 = arith.constant 0 : i32
    %c0_i32_1 = arith.constant 0 : i32
    return %c0_i32, %c0_i32_0 : i32, i32
  }
  func.func @transform_2(%arg0: i32) -> (i32, i32) {
    %c0_i32 = arith.constant 0 : i32
    %c0_i32_0 = arith.constant 0 : i32
    %c0_i32_1 = arith.constant 0 : i32
    return %c0_i32, %c0_i32_0 : i32, i32
  }
  func.func @transform_3(%arg0: i32) -> (i32, i32) {
    %c0_i32 = arith.constant 0 : i32
    %c0_i32_0 = arith.constant 0 : i32
    return %c0_i32, %arg0 : i32, i32
  }
  func.func @transform_4(%arg0: i32) -> (i32, i32) {
    %c0_i32 = arith.constant 0 : i32
    %c0_i32_0 = arith.constant 0 : i32
    return %arg0, %c0_i32 : i32, i32
  }
}

</mosaic_0001>

<llo_original>
// kernel: tpu_custom_call.1
$region0: #{tpu_custom_call.1}
  #allocation0 [shape = 'u32[]', space=smem, size = 0x4, offset = 0x4, fixed_abs, tag = 'smem constant byte address 0x4 - core index']
  #allocation1 [shape = 'u32[144,128]{1,0:T(1,128)}', space=vmem, size = 0x12000, scoped, tag = 'internal scratch']
  %s0 = inlined_call_operand.hbm [shape: f32[128,256], index: 0, kind: input, shape index: {}]
  %s1 = inlined_call_operand.hbm [shape: bf16[256,512], index: 1, kind: input, shape index: {}]
  %s2 = inlined_call_operand.hbm [shape: f32[1,512], index: 2, kind: input, shape index: {}]
  %s3 = inlined_call_operand.hbm [shape: bf16[256,128], index: 3, kind: output, shape index: {0}]
  %s4 = inlined_call_operand.hbm [shape: bf16[128,256], index: 4, kind: output, shape index: {1}]
  %5 = xla_tuple %s3, %s4
  %s6 = sld [smem:[#allocation0]]
  $region42: #{tpu_custom_call.1} parent=0
    _
  %s8 = ssub.s32 1, %s6
  %s9 = scalar_select 0, %s8, %s6
  $region1: #{tpu_custom_call.1} parent=0
    #allocation2 [shape = 'u8[131072]{0}', space=vmem, size = 0x20000, scoped, tag = 'input window, operand 0, single buffered']
    #allocation3 [shape = 's32[1]{0}', space=sflag, size = 0x4, scoped, tag = 'scoped memory for tpu_custom_call.1']
    #allocation4 [shape = 's32[1]{0}', space=sflag, size = 0x4, scoped, tag = 'scoped memory for tpu_custom_call.1']
    #allocation5 [shape = 'u8[262144]{0}', space=vmem, size = 0x40000, scoped, tag = 'input window, operand 1, single buffered']
    #allocation6 [shape = 's32[1]{0}', space=sflag, size = 0x4, scoped, tag = 'scoped memory for tpu_custom_call.1']
    #allocation7 [shape = 'u8[2048]{0}', space=vmem, size = 0x800, scoped, tag = 'input window, operand 2, single buffered']
    #allocation8 [shape = 'u8[65536]{0}', space=vmem, size = 0x10000, scoped, tag = 'output window, operand 0, single buffered']
    #allocation9 [shape = 'u8[65536]{0}', space=vmem, size = 0x10000, scoped, tag = 'output window, operand 1, single buffered']
    #allocation10 [shape = 's32[1]{0}', space=sflag, size = 0x4, scoped, tag = 'scoped memory for tpu_custom_call.1']
    %10 = vsyncpa [#allocation3], 0
    %11 = vsyncpa [#allocation6], 0
    %12 = vsyncpa [#allocation4], 0
    %13 = vsyncpa [#allocation10], 0
    // Predicated region
    $region2: #{tpu_custom_call.1} parent=1 // pred_check
      _
    $region3: #{tpu_custom_call.1} parent=1 // pred_check_branch
      %15 = sbr.rel (0) target = $region5
    $region4: #{tpu_custom_call.1} parent=1 // pred_region
      %s17 = ssub.s32 4096, 4096
      %18 = vsyncadd [#allocation3], %s17
      %s19 = sshll.u32 [#allocation2], 4
      %s20 = int_to_ptr.vmem [resolvable:$true] %s19
      %25 = dma.hbm_to_vmem [thread:$0]  %s0, 4096, %s20, [#allocation3], 256, 256, 16
    $region5: #{tpu_custom_call.1} parent=1 // pred_fallthru
      _
    // Predicated region
    $region6: #{tpu_custom_call.1} parent=1 // pred_check
      _
    $region7: #{tpu_custom_call.1} parent=1 // pred_check_branch
      %27 = sbr.rel (0) target = $region9
    $region8: #{tpu_custom_call.1} parent=1 // pred_region
      %s29 = ssub.s32 8192, 8192
      %30 = vsyncadd [#allocation6], %s29
      %s31 = sshll.u32 [#allocation5], 4
      %s32 = int_to_ptr.vmem [resolvable:$true] %s31
      %37 = dma.hbm_to_vmem [thread:$0]  %s1, 8192, %s32, [#allocation6], 256, 256, 16
    $region9: #{tpu_custom_call.1} parent=1 // pred_fallthru
      _
    // Predicated region
    $region10: #{tpu_custom_call.1} parent=1 // pred_check
      _
    $region11: #{tpu_custom_call.1} parent=1 // pred_check_branch
      %39 = sbr.rel (0) target = $region13
    $region12: #{tpu_custom_call.1} parent=1 // pred_region
      %s41 = ssub.s32 64, 64
      %42 = vsyncadd [#allocation6], %s41
      %s44 = sshll.u32 [#allocation7], 4
      %s45 = int_to_ptr.vmem [resolvable:$true] %s44
      %47 = dma.hbm_to_vmem [thread:$0]  %s2, 64, %s45, [#allocation6]
    $region13: #{tpu_custom_call.1} parent=1 // pred_fallthru
      _
    // Predicated region
    $region14: #{tpu_custom_call.1} parent=1 // pred_check
      _
    $region15: #{tpu_custom_call.1} parent=1 // pred_check_branch
      %49 = sbr.rel (0) target = $region17
    $region16: #{tpu_custom_call.1} parent=1 // pred_region
      %50 = dma.done [#allocation3], 4096
    $region17: #{tpu_custom_call.1} parent=1 // pred_fallthru
      _
    // Predicated region
    $region18: #{tpu_custom_call.1} parent=1 // pred_check
      _
    $region19: #{tpu_custom_call.1} parent=1 // pred_check_branch
      %52 = sbr.rel (0) target = $region21
    $region20: #{tpu_custom_call.1} parent=1 // pred_region
      %53 = dma.done [#allocation6], 8192
    $region21: #{tpu_custom_call.1} parent=1 // pred_fallthru
      _
    // Predicated region
    $region22: #{tpu_custom_call.1} parent=1 // pred_check
      _
    $region23: #{tpu_custom_call.1} parent=1 // pred_check_branch
      %55 = sbr.rel (0) target = $region25
    $region24: #{tpu_custom_call.1} parent=1 // pred_region
      %56 = dma.done [#allocation6], 64
    $region25: #{tpu_custom_call.1} parent=1 // pred_fallthru
      _
    %v57 = vld [vmem:[#allocation2] sm:$0xff]
    %v58 = vld [vmem:[#allocation2 + $0x8] sm:$0xff]
    %v59 = vld [vmem:[#allocation2 + $0x10] sm:$0xff]
    %v60 = vld [vmem:[#allocation2 + $0x18] sm:$0xff]
    %v61 = vld [vmem:[#allocation2 + $0x20] sm:$0xff]
    %v62 = vld [vmem:[#allocation2 + $0x28] sm:$0xff]
    %v63 = vld [vmem:[#allocation2 + $0x30] sm:$0xff]
    %v64 = vld [vmem:[#allocation2 + $0x38] sm:$0xff]
    %v65 = vld [vmem:[#allocation2 + $0x40] sm:$0xff]
    %v66 = vld [vmem:[#allocation2 + $0x48] sm:$0xff]
    %v67 = vld [vmem:[#allocation2 + $0x50] sm:$0xff]
    %v68 = vld [vmem:[#allocation2 + $0x58] sm:$0xff]
    %v69 = vld [vmem:[#allocation2 + $0x60] sm:$0xff]
    %v70 = vld [vmem:[#allocation2 + $0x68] sm:$0xff]
    %v71 = vld [vmem:[#allocation2 + $0x70] sm:$0xff]
    %v72 = vld [vmem:[#allocation2 + $0x78] sm:$0xff]
    %v73 = vld [vmem:[#allocation2 + $0x80] sm:$0xff]
    %v74 = vld [vmem:[#allocation2 + $0x88] sm:$0xff]
    %v75 = vld [vmem:[#allocation2 + $0x90] sm:$0xff]
    %v76 = vld [vmem:[#allocation2 + $0x98] sm:$0xff]
    %v77 = vld [vmem:[#allocation2 + $0xa0] sm:$0xff]
    %v78 = vld [vmem:[#allocation2 + $0xa8] sm:$0xff]
    %v79 = vld [vmem:[#allocation2 + $0xb0] sm:$0xff]
    %v80 = vld [vmem:[#allocation2 + $0xb8] sm:$0xff]
    %v81 = vld [vmem:[#allocation2 + $0xc0] sm:$0xff]
    %v82 = vld [vmem:[#allocation2 + $0xc8] sm:$0xff]
    %v83 = vld [vmem:[#allocation2 + $0xd0] sm:$0xff]
    %v84 = vld [vmem:[#allocation2 + $0xd8] sm:$0xff]
    %v85 = vld [vmem:[#allocation2 + $0xe0] sm:$0xff]
    %v86 = vld [vmem:[#allocation2 + $0xe8] sm:$0xff]
    %v87 = vld [vmem:[#allocation2 + $0xf0] sm:$0xff]
    %v88 = vld [vmem:[#allocation2 + $0xf8] sm:$0xff]
    %v89 = vpack.c.bf16 %v59, %v57
    %v90 = vpack.c.bf16 %v60, %v58
    %v91 = vpack.c.bf16 %v63, %v61
    %v92 = vpack.c.bf16 %v64, %v62
    %v93 = vpack.c.bf16 %v67, %v65
    %v94 = vpack.c.bf16 %v68, %v66
    %v95 = vpack.c.bf16 %v71, %v69
    %v96 = vpack.c.bf16 %v72, %v70
    %v97 = vpack.c.bf16 %v75, %v73
    %v98 = vpack.c.bf16 %v76, %v74
    %v99 = vpack.c.bf16 %v79, %v77
    %v100 = vpack.c.bf16 %v80, %v78
    %v101 = vpack.c.bf16 %v83, %v81
    %v102 = vpack.c.bf16 %v84, %v82
    %v103 = vpack.c.bf16 %v87, %v85
    %v104 = vpack.c.bf16 %v88, %v86
    %v105 = vld [vmem:[#allocation5] sm:$0xff]
    %v106 = vld [vmem:[#allocation5 + $0x8] sm:$0xff]
    %v107 = vld [vmem:[#allocation5 + $0x10] sm:$0xff]
    %v108 = vld [vmem:[#allocation5 + $0x18] sm:$0xff]
    %v109 = vld [vmem:[#allocation5 + $0x20] sm:$0xff]
    %v110 = vld [vmem:[#allocation5 + $0x28] sm:$0xff]
    %v111 = vld [vmem:[#allocation5 + $0x30] sm:$0xff]
    %v112 = vld [vmem:[#allocation5 + $0x38] sm:$0xff]
    %v113 = vld [vmem:[#allocation5 + $0x40] sm:$0xff]
    %v114 = vld [vmem:[#allocation5 + $0x48] sm:$0xff]
    %v115 = vld [vmem:[#allocation5 + $0x50] sm:$0xff]
    %v116 = vld [vmem:[#allocation5 + $0x58] sm:$0xff]
    %v117 = vld [vmem:[#allocation5 + $0x60] sm:$0xff]
    %v118 = vld [vmem:[#allocation5 + $0x68] sm:$0xff]
    %v119 = vld [vmem:[#allocation5 + $0x70] sm:$0xff]
    %v120 = vld [vmem:[#allocation5 + $0x78] sm:$0xff]
    %v121 = vld [vmem:[#allocation5 + $0x80] sm:$0xff]
    %v122 = vld [vmem:[#allocation5 + $0x88] sm:$0xff]
    %v123 = vld [vmem:[#allocation5 + $0x90] sm:$0xff]
    %v124 = vld [vmem:[#allocation5 + $0x98] sm:$0xff]
    %v125 = vld [vmem:[#allocation5 + $0xa0] sm:$0xff]
    %v126 = vld [vmem:[#allocation5 + $0xa8] sm:$0xff]
    %v127 = vld [vmem:[#allocation5 + $0xb0] sm:$0xff]
    %v128 = vld [vmem:[#allocation5 + $0xb8] sm:$0xff]
    %v129 = vld [vmem:[#allocation5 + $0xc0] sm:$0xff]
    %v130 = vld [vmem:[#allocation5 + $0xc8] sm:$0xff]
    %v131 = vld [vmem:[#allocation5 + $0xd0] sm:$0xff]
    %v132 = vld [vmem:[#allocation5 + $0xd8] sm:$0xff]
    %v133 = vld [vmem:[#allocation5 + $0xe0] sm:$0xff]
    %v134 = vld [vmem:[#allocation5 + $0xe8] sm:$0xff]
    %v135 = vld [vmem:[#allocation5 + $0xf0] sm:$0xff]
    %v136 = vld [vmem:[#allocation5 + $0xf8] sm:$0xff]
    %v137 = vld [vmem:[#allocation5 + $0x100] sm:$0xff]
    %v138 = vld [vmem:[#allocation5 + $0x108] sm:$0xff]
    %v139 = vld [vmem:[#allocation5 + $0x110] sm:$0xff]
    %v140 = vld [vmem:[#allocation5 + $0x118] sm:$0xff]
    %v141 = vld [vmem:[#allocation5 + $0x120] sm:$0xff]
    %v142 = vld [vmem:[#allocation5 + $0x128] sm:$0xff]
    %v143 = vld [vmem:[#allocation5 + $0x130] sm:$0xff]
    %v144 = vld [vmem:[#allocation5 + $0x138] sm:$0xff]
    %v145 = vld [vmem:[#allocation5 + $0x140] sm:$0xff]
    %v146 = vld [vmem:[#allocation5 + $0x148] sm:$0xff]
    %v147 = vld [vmem:[#allocation5 + $0x150] sm:$0xff]
    %v148 = vld [vmem:[#allocation5 + $0x158] sm:$0xff]
    %v149 = vld [vmem:[#allocation5 + $0x160] sm:$0xff]
    %v150 = vld [vmem:[#allocation5 + $0x168] sm:$0xff]
    %v151 = vld [vmem:[#allocation5 + $0x170] sm:$0xff]
    %v152 = vld [vmem:[#allocation5 + $0x178] sm:$0xff]
    %v153 = vld [vmem:[#allocation5 + $0x180] sm:$0xff]
    %v154 = vld [vmem:[#allocation5 + $0x188] sm:$0xff]
    %v155 = vld [vmem:[#allocation5 + $0x190] sm:$0xff]
    %v156 = vld [vmem:[#allocation5 + $0x198] sm:$0xff]
    %v157 = vld [vmem:[#allocation5 + $0x1a0] sm:$0xff]
    %v158 = vld [vmem:[#allocation5 + $0x1a8] sm:$0xff]
    %v159 = vld [vmem:[#allocation5 + $0x1b0] sm:$0xff]
    %v160 = vld [vmem:[#allocation5 + $0x1b8] sm:$0xff]
    %v161 = vld [vmem:[#allocation5 + $0x1c0] sm:$0xff]
    %v162 = vld [vmem:[#allocation5 + $0x1c8] sm:$0xff]
    %v163 = vld [vmem:[#allocation5 + $0x1d0] sm:$0xff]
    %v164 = vld [vmem:[#allocation5 + $0x1d8] sm:$0xff]
    %v165 = vld [vmem:[#allocation5 + $0x1e0] sm:$0xff]
    %v166 = vld [vmem:[#allocation5 + $0x1e8] sm:$0xff]
    %v167 = vld [vmem:[#allocation5 + $0x1f0] sm:$0xff]
    %v168 = vld [vmem:[#allocation5 + $0x1f8] sm:$0xff]
    %v169 = vld [vmem:[#allocation7] sm:$0xf]
    %v171 = vlaneseq
    %v172 = vshrl.u32 %v171, 7
    %v173 = vsub.s32 0, %v172
    %v174 = vrot.slane %v169, %v173
    %v175 = vlaneseq
    %v176 = vshrl.u32 %v175, 7
    %v177 = vsub.s32 1, %v176
    %v178 = vrot.slane %v169, %v177
    %v179 = vlaneseq
    %v180 = vshrl.u32 %v179, 7
    %v181 = vsub.s32 2, %v180
    %v182 = vrot.slane %v169, %v181
    %v183 = vlaneseq
    %v184 = vshrl.u32 %v183, 7
    %v185 = vsub.s32 3, %v184
    %v186 = vrot.slane %v169, %v185
    %v255 = vunpack.c.l.b16 %v105
    %v256 = vunpack.c.h.b16 %v105
    %v257 = vunpack.c.l.b16 %v106
    %v258 = vunpack.c.h.b16 %v106
    %v259 = vunpack.c.l.b16 %v107
    %v260 = vunpack.c.h.b16 %v107
    %v261 = vunpack.c.l.b16 %v108
    %v262 = vunpack.c.h.b16 %v108
    %v263 = vunpack.c.l.b16 %v109
    %v264 = vunpack.c.h.b16 %v109
    %v265 = vunpack.c.l.b16 %v110
    %v266 = vunpack.c.h.b16 %v110
    %v267 = vunpack.c.l.b16 %v111
    %v268 = vunpack.c.h.b16 %v111
    %v269 = vunpack.c.l.b16 %v112
    %v270 = vunpack.c.h.b16 %v112
    %v271 = vunpack.c.l.b16 %v113
    %v272 = vunpack.c.h.b16 %v113
    %v273 = vunpack.c.l.b16 %v114
    %v274 = vunpack.c.h.b16 %v114
    %v275 = vunpack.c.l.b16 %v115
    %v276 = vunpack.c.h.b16 %v115
    %v277 = vunpack.c.l.b16 %v116
    %v278 = vunpack.c.h.b16 %v116
    %v279 = vunpack.c.l.b16 %v117
    %v280 = vunpack.c.h.b16 %v117
    %v281 = vunpack.c.l.b16 %v118
    %v282 = vunpack.c.h.b16 %v118
    %v283 = vunpack.c.l.b16 %v119
    %v284 = vunpack.c.h.b16 %v119
    %v285 = vunpack.c.l.b16 %v120
    %v286 = vunpack.c.h.b16 %v120
    %v287 = vunpack.c.l.b16 %v121
    %v288 = vunpack.c.h.b16 %v121
    %v289 = vunpack.c.l.b16 %v122
    %v290 = vunpack.c.h.b16 %v122
    %v291 = vunpack.c.l.b16 %v123
    %v292 = vunpack.c.h.b16 %v123
    %v293 = vunpack.c.l.b16 %v124
    %v294 = vunpack.c.h.b16 %v124
    %v295 = vunpack.c.l.b16 %v125
    %v296 = vunpack.c.h.b16 %v125
    %v297 = vunpack.c.l.b16 %v126
    %v298 = vunpack.c.h.b16 %v126
    %v299 = vunpack.c.l.b16 %v127
    %v300 = vunpack.c.h.b16 %v127
    %v301 = vunpack.c.l.b16 %v128
    %v302 = vunpack.c.h.b16 %v128
    %v303 = vunpack.c.l.b16 %v129
    %v304 = vunpack.c.h.b16 %v129
    %v305 = vunpack.c.l.b16 %v130
    %v306 = vunpack.c.h.b16 %v130
    %v307 = vunpack.c.l.b16 %v131
    %v308 = vunpack.c.h.b16 %v131
    %v309 = vunpack.c.l.b16 %v132
    %v310 = vunpack.c.h.b16 %v132
    %v311 = vunpack.c.l.b16 %v133
    %v312 = vunpack.c.h.b16 %v133
    %v313 = vunpack.c.l.b16 %v134
    %v314 = vunpack.c.h.b16 %v134
    %v315 = vunpack.c.l.b16 %v135
    %v316 = vunpack.c.h.b16 %v135
    %v317 = vunpack.c.l.b16 %v136
    %v318 = vunpack.c.h.b16 %v136
    %v319 = vunpack.c.l.b16 %v137
    %v320 = vunpack.c.h.b16 %v137
    %v321 = vunpack.c.l.b16 %v138
    %v322 = vunpack.c.h.b16 %v138
    %v323 = vunpack.c.l.b16 %v139
    %v324 = vunpack.c.h.b16 %v139
    %v325 = vunpack.c.l.b16 %v140
    %v326 = vunpack.c.h.b16 %v140
    %v327 = vunpack.c.l.b16 %v141
    %v328 = vunpack.c.h.b16 %v141
    %v329 = vunpack.c.l.b16 %v142
    %v330 = vunpack.c.h.b16 %v142
    %v331 = vunpack.c.l.b16 %v143
    %v332 = vunpack.c.h.b16 %v143
    %v333 = vunpack.c.l.b16 %v144
    %v334 = vunpack.c.h.b16 %v144
    %v335 = vunpack.c.l.b16 %v145
    %v336 = vunpack.c.h.b16 %v145
    %v337 = vunpack.c.l.b16 %v146
    %v338 = vunpack.c.h.b16 %v146
    %v339 = vunpack.c.l.b16 %v147
    %v340 = vunpack.c.h.b16 %v147
    %v341 = vunpack.c.l.b16 %v148
    %v342 = vunpack.c.h.b16 %v148
    %v343 = vunpack.c.l.b16 %v149
    %v344 = vunpack.c.h.b16 %v149
    %v345 = vunpack.c.l.b16 %v150
    %v346 = vunpack.c.h.b16 %v150
    %v347 = vunpack.c.l.b16 %v151
    %v348 = vunpack.c.h.b16 %v151
    %v349 = vunpack.c.l.b16 %v152
    %v350 = vunpack.c.h.b16 %v152
    %v351 = vunpack.c.l.b16 %v153
    %v352 = vunpack.c.h.b16 %v153
    %v353 = vunpack.c.l.b16 %v154
    %v354 = vunpack.c.h.b16 %v154
    %v355 = vunpack.c.l.b16 %v155
    %v356 = vunpack.c.h.b16 %v155
    %v357 = vunpack.c.l.b16 %v156
    %v358 = vunpack.c.h.b16 %v156
    %v359 = vunpack.c.l.b16 %v157
    %v360 = vunpack.c.h.b16 %v157
    %v361 = vunpack.c.l.b16 %v158
    %v362 = vunpack.c.h.b16 %v158
    %v363 = vunpack.c.l.b16 %v159
    %v364 = vunpack.c.h.b16 %v159
    %v365 = vunpack.c.l.b16 %v160
    %v366 = vunpack.c.h.b16 %v160
    %v367 = vunpack.c.l.b16 %v161
    %v368 = vunpack.c.h.b16 %v161
    %v369 = vunpack.c.l.b16 %v162
    %v370 = vunpack.c.h.b16 %v162
    %v371 = vunpack.c.l.b16 %v163
    %v372 = vunpack.c.h.b16 %v163
    %v373 = vunpack.c.l.b16 %v164
    %v374 = vunpack.c.h.b16 %v164
    %v375 = vunpack.c.l.b16 %v165
    %v376 = vunpack.c.h.b16 %v165
    %v377 = vunpack.c.l.b16 %v166
    %v378 = vunpack.c.h.b16 %v166
    %v379 = vunpack.c.l.b16 %v167
    %v380 = vunpack.c.h.b16 %v167
    %v381 = vunpack.c.l.b16 %v168
    %v382 = vunpack.c.h.b16 %v168
    %v383 = vpack.c.b16 %v259, %v255
    %v384 = vpack.c.b16 %v260, %v256
    %v385 = vpack.c.b16 %v261, %v257
    %v386 = vpack.c.b16 %v262, %v258
    %v387 = vpack.c.b16 %v267, %v263
    %v388 = vpack.c.b16 %v268, %v264
    %v389 = vpack.c.b16 %v269, %v265
    %v390 = vpack.c.b16 %v270, %v266
    %v391 = vpack.c.b16 %v275, %v271
    %v392 = vpack.c.b16 %v276, %v272
    %v393 = vpack.c.b16 %v277, %v273
    %v394 = vpack.c.b16 %v278, %v274
    %v395 = vpack.c.b16 %v283, %v279
    %v396 = vpack.c.b16 %v284, %v280
    %v397 = vpack.c.b16 %v285, %v281
    %v398 = vpack.c.b16 %v286, %v282
    %v399 = vpack.c.b16 %v291, %v287
    %v400 = vpack.c.b16 %v292, %v288
    %v401 = vpack.c.b16 %v293, %v289
    %v402 = vpack.c.b16 %v294, %v290
    %v403 = vpack.c.b16 %v299, %v295
    %v404 = vpack.c.b16 %v300, %v296
    %v405 = vpack.c.b16 %v301, %v297
    %v406 = vpack.c.b16 %v302, %v298
    %v407 = vpack.c.b16 %v307, %v303
    %v408 = vpack.c.b16 %v308, %v304
    %v409 = vpack.c.b16 %v309, %v305
    %v410 = vpack.c.b16 %v310, %v306
    %v411 = vpack.c.b16 %v315, %v311
    %v412 = vpack.c.b16 %v316, %v312
    %v413 = vpack.c.b16 %v317, %v313
    %v414 = vpack.c.b16 %v318, %v314
    %v415 = vpack.c.b16 %v323, %v319
    %v416 = vpack.c.b16 %v324, %v320
    %v417 = vpack.c.b16 %v325, %v321
    %v418 = vpack.c.b16 %v326, %v322
    %v419 = vpack.c.b16 %v331, %v327
    %v420 = vpack.c.b16 %v332, %v328
    %v421 = vpack.c.b16 %v333, %v329
    %v422 = vpack.c.b16 %v334, %v330
    %v423 = vpack.c.b16 %v339, %v335
    %v424 = vpack.c.b16 %v340, %v336
    %v425 = vpack.c.b16 %v341, %v337
    %v426 = vpack.c.b16 %v342, %v338
    %v427 = vpack.c.b16 %v347, %v343
    %v428 = vpack.c.b16 %v348, %v344
    %v429 = vpack.c.b16 %v349, %v345
    %v430 = vpack.c.b16 %v350, %v346
    %v431 = vpack.c.b16 %v355, %v351
    %v432 = vpack.c.b16 %v356, %v352
    %v433 = vpack.c.b16 %v357, %v353
    %v434 = vpack.c.b16 %v358, %v354
    %v435 = vpack.c.b16 %v363, %v359
    %v436 = vpack.c.b16 %v364, %v360
    %v437 = vpack.c.b16 %v365, %v361
    %v438 = vpack.c.b16 %v366, %v362
    %v439 = vpack.c.b16 %v371, %v367
    %v440 = vpack.c.b16 %v372, %v368
    %v441 = vpack.c.b16 %v373, %v369
    %v442 = vpack.c.b16 %v374, %v370
    %v443 = vpack.c.b16 %v379, %v375
    %v444 = vpack.c.b16 %v380, %v376
    %v445 = vpack.c.b16 %v381, %v377
    %v446 = vpack.c.b16 %v382, %v378
    %511 = vmatprep.subr.bf16.mxu0 %v412
    %512 = vmatpush1.bf16.msra.mxu0 %v411
    %513 = vmatprep.subr.bf16.mxu0 %v408
    %514 = vmatpush1.bf16.msra.mxu0 %v407
    %515 = vmatprep.subr.bf16.mxu0 %v404
    %516 = vmatpush1.bf16.msra.mxu0 %v403
    %517 = vmatprep.subr.bf16.mxu0 %v400
    %518 = vmatpush1.bf16.msra.mxu0 %v399
    %519 = vmatprep.subr.bf16.mxu0 %v396
    %520 = vmatpush1.bf16.msra.mxu0 %v395
    %521 = vmatprep.subr.bf16.mxu0 %v392
    %522 = vmatpush1.bf16.msra.mxu0 %v391
    %523 = vmatprep.subr.bf16.mxu0 %v388
    %524 = vmatpush1.bf16.msra.mxu0 %v387
    %525 = vmatprep.subr.bf16.mxu0 %v384
    %526 = vmatpush1.bf16.msra.mxu0 %v383
    %527 = vmatprep.subr.bf16.mxu0 %v444
    %528 = vmatpush2.bf16.msra.mxu0 %v443
    %529 = vmatprep.subr.bf16.mxu0 %v440
    %530 = vmatpush2.bf16.msra.mxu0 %v439
    %531 = vmatprep.subr.bf16.mxu0 %v436
    %532 = vmatpush2.bf16.msra.mxu0 %v435
    %533 = vmatprep.subr.bf16.mxu0 %v432
    %534 = vmatpush2.bf16.msra.mxu0 %v431
    %535 = vmatprep.subr.bf16.mxu0 %v428
    %536 = vmatpush2.bf16.msra.mxu0 %v427
    %537 = vmatprep.subr.bf16.mxu0 %v424
    %538 = vmatpush2.bf16.msra.mxu0 %v423
    %539 = vmatprep.subr.bf16.mxu0 %v420
    %540 = vmatpush2.bf16.msra.mxu0 %v419
    %541 = vmatprep.subr.bf16.mxu0 %v416
    %542 = vmatpush2.bf16.msra.mxu0 %v415
    %543 = vmatprep.mubr.bf16.mxu0 %v90
    %544 = vmatmul.mubr.bf16.gmra.mxu0 %v89
    %v545 = vpop.f32.mrf.mxu0
    %v546 = vadd.f32 %v174, %v545
    %v547 = vpop.f32.mrf.mxu0
    %v548 = vadd.f32 %v178, %v547
    %v549 = vpop.f32.mrf.mxu0
    %v550 = vadd.f32 %v174, %v549
    %v551 = vpop.f32.mrf.mxu0
    %v552 = vadd.f32 %v178, %v551
    %553 = vmatprep.mubr.bf16.mxu0 %v92
    %554 = vmatmul.mubr.bf16.gmra.mxu0 %v91
    %v555 = vpop.f32.mrf.mxu0
    %v556 = vadd.f32 %v174, %v555
    %v557 = vpop.f32.mrf.mxu0
    %v558 = vadd.f32 %v178, %v557
    %v559 = vpop.f32.mrf.mxu0
    %v560 = vadd.f32 %v174, %v559
    %v561 = vpop.f32.mrf.mxu0
    %v562 = vadd.f32 %v178, %v561
    %563 = vmatprep.mubr.bf16.mxu0 %v94
    %564 = vmatmul.mubr.bf16.gmra.mxu0 %v93
    %v565 = vpop.f32.mrf.mxu0
    %v566 = vadd.f32 %v174, %v565
    %v567 = vpop.f32.mrf.mxu0
    %v568 = vadd.f32 %v178, %v567
    %v569 = vpop.f32.mrf.mxu0
    %v570 = vadd.f32 %v174, %v569
    %v571 = vpop.f32.mrf.mxu0
    %v572 = vadd.f32 %v178, %v571
    %573 = vmatprep.mubr.bf16.mxu0 %v96
    %574 = vmatmul.mubr.bf16.gmra.mxu0 %v95
    %v575 = vpop.f32.mrf.mxu0
    %v576 = vadd.f32 %v174, %v575
    %v577 = vpop.f32.mrf.mxu0
    %v578 = vadd.f32 %v178, %v577
    %v579 = vpop.f32.mrf.mxu0
    %v580 = vadd.f32 %v174, %v579
    %v581 = vpop.f32.mrf.mxu0
    %v582 = vadd.f32 %v178, %v581
    %583 = vmatprep.mubr.bf16.mxu0 %v98
    %584 = vmatmul.mubr.bf16.gmra.mxu0 %v97
    %v585 = vpop.f32.mrf.mxu0
    %v586 = vadd.f32 %v174, %v585
    %v587 = vpop.f32.mrf.mxu0
    %v588 = vadd.f32 %v178, %v587
    %v589 = vpop.f32.mrf.mxu0
    %v590 = vadd.f32 %v174, %v589
    %v591 = vpop.f32.mrf.mxu0
    %v592 = vadd.f32 %v178, %v591
    %593 = vmatprep.mubr.bf16.mxu0 %v100
    %594 = vmatmul.mubr.bf16.gmra.mxu0 %v99
    %v595 = vpop.f32.mrf.mxu0
    %v596 = vadd.f32 %v174, %v595
    %v597 = vpop.f32.mrf.mxu0
    %v598 = vadd.f32 %v178, %v597
    %v599 = vpop.f32.mrf.mxu0
    %v600 = vadd.f32 %v174, %v599
    %v601 = vpop.f32.mrf.mxu0
    %v602 = vadd.f32 %v178, %v601
    %603 = vmatprep.mubr.bf16.mxu0 %v102
    %604 = vmatmul.mubr.bf16.gmra.mxu0 %v101
    %v605 = vpop.f32.mrf.mxu0
    %v606 = vadd.f32 %v174, %v605
    %v607 = vpop.f32.mrf.mxu0
    %v608 = vadd.f32 %v178, %v607
    %v609 = vpop.f32.mrf.mxu0
    %v610 = vadd.f32 %v174, %v609
    %v611 = vpop.f32.mrf.mxu0
    %v612 = vadd.f32 %v178, %v611
    %613 = vmatprep.mubr.bf16.mxu0 %v104
    %614 = vmatmul.mubr.bf16.gmra.mxu0 %v103
    %v615 = vpop.f32.mrf.mxu0
    %v616 = vadd.f32 %v174, %v615
    %v617 = vpop.f32.mrf.mxu0
    %v618 = vadd.f32 %v178, %v617
    %v619 = vpop.f32.mrf.mxu0
    %v620 = vadd.f32 %v174, %v619
    %v621 = vpop.f32.mrf.mxu0
    %v622 = vadd.f32 %v178, %v621
    %623 = vdwg.mxu0
    %624 = vmatprep.subr.bf16.mxu0 %v414
    %625 = vmatpush1.bf16.msra.mxu0 %v413
    %626 = vmatprep.subr.bf16.mxu0 %v410
    %627 = vmatpush1.bf16.msra.mxu0 %v409
    %628 = vmatprep.subr.bf16.mxu0 %v406
    %629 = vmatpush1.bf16.msra.mxu0 %v405
    %630 = vmatprep.subr.bf16.mxu0 %v402
    %631 = vmatpush1.bf16.msra.mxu0 %v401
    %632 = vmatprep.subr.bf16.mxu0 %v398
    %633 = vmatpush1.bf16.msra.mxu0 %v397
    %634 = vmatprep.subr.bf16.mxu0 %v394
    %635 = vmatpush1.bf16.msra.mxu0 %v393
    %636 = vmatprep.subr.bf16.mxu0 %v390
    %637 = vmatpush1.bf16.msra.mxu0 %v389
    %638 = vmatprep.subr.bf16.mxu0 %v386
    %639 = vmatpush1.bf16.msra.mxu0 %v385
    %640 = vmatprep.subr.bf16.mxu0 %v446
    %641 = vmatpush2.bf16.msra.mxu0 %v445
    %642 = vmatprep.subr.bf16.mxu0 %v442
    %643 = vmatpush2.bf16.msra.mxu0 %v441
    %644 = vmatprep.subr.bf16.mxu0 %v438
    %645 = vmatpush2.bf16.msra.mxu0 %v437
    %646 = vmatprep.subr.bf16.mxu0 %v434
    %647 = vmatpush2.bf16.msra.mxu0 %v433
    %648 = vmatprep.subr.bf16.mxu0 %v430
    %649 = vmatpush2.bf16.msra.mxu0 %v429
    %650 = vmatprep.subr.bf16.mxu0 %v426
    %651 = vmatpush2.bf16.msra.mxu0 %v425
    %652 = vmatprep.subr.bf16.mxu0 %v422
    %653 = vmatpush2.bf16.msra.mxu0 %v421
    %654 = vmatprep.subr.bf16.mxu0 %v418
    %655 = vmatpush2.bf16.msra.mxu0 %v417
    %656 = vmatprep.mubr.bf16.mxu0 %v90
    %657 = vmatmul.mubr.bf16.gmra.mxu0 %v89
    %v658 = vpop.f32.mrf.mxu0
    %v659 = vadd.f32 %v182, %v658
    %v660 = vpop.f32.mrf.mxu0
    %v661 = vadd.f32 %v186, %v660
    %v662 = vpop.f32.mrf.mxu0
    %v663 = vadd.f32 %v182, %v662
    %v664 = vpop.f32.mrf.mxu0
    %v665 = vadd.f32 %v186, %v664
    %666 = vmatprep.mubr.bf16.mxu0 %v92
    %667 = vmatmul.mubr.bf16.gmra.mxu0 %v91
    %v668 = vpop.f32.mrf.mxu0
    %v669 = vadd.f32 %v182, %v668
    %v670 = vpop.f32.mrf.mxu0
    %v671 = vadd.f32 %v186, %v670
    %v672 = vpop.f32.mrf.mxu0
    %v673 = vadd.f32 %v182, %v672
    %v674 = vpop.f32.mrf.mxu0
    %v675 = vadd.f32 %v186, %v674
    %676 = vmatprep.mubr.bf16.mxu0 %v94
    %677 = vmatmul.mubr.bf16.gmra.mxu0 %v93
    %v678 = vpop.f32.mrf.mxu0
    %v679 = vadd.f32 %v182, %v678
    %v680 = vpop.f32.mrf.mxu0
    %v681 = vadd.f32 %v186, %v680
    %v682 = vpop.f32.mrf.mxu0
    %v683 = vadd.f32 %v182, %v682
    %v684 = vpop.f32.mrf.mxu0
    %v685 = vadd.f32 %v186, %v684
    %686 = vmatprep.mubr.bf16.mxu0 %v96
    %687 = vmatmul.mubr.bf16.gmra.mxu0 %v95
    %v688 = vpop.f32.mrf.mxu0
    %v689 = vadd.f32 %v182, %v688
    %v690 = vpop.f32.mrf.mxu0
    %v691 = vadd.f32 %v186, %v690
    %v692 = vpop.f32.mrf.mxu0
    %v693 = vadd.f32 %v182, %v692
    %v694 = vpop.f32.mrf.mxu0
    %v695 = vadd.f32 %v186, %v694
    %696 = vmatprep.mubr.bf16.mxu0 %v98
    %697 = vmatmul.mubr.bf16.gmra.mxu0 %v97
    %v698 = vpop.f32.mrf.mxu0
    %v699 = vadd.f32 %v182, %v698
    %v700 = vpop.f32.mrf.mxu0
    %v701 = vadd.f32 %v186, %v700
    %v702 = vpop.f32.mrf.mxu0
    %v703 = vadd.f32 %v182, %v702
    %v704 = vpop.f32.mrf.mxu0
    %v705 = vadd.f32 %v186, %v704
    %706 = vmatprep.mubr.bf16.mxu0 %v100
    %707 = vmatmul.mubr.bf16.gmra.mxu0 %v99
    %v708 = vpop.f32.mrf.mxu0
    %v709 = vadd.f32 %v182, %v708
    %v710 = vpop.f32.mrf.mxu0
    %v711 = vadd.f32 %v186, %v710
    %v712 = vpop.f32.mrf.mxu0
    %v713 = vadd.f32 %v182, %v712
    %v714 = vpop.f32.mrf.mxu0
    %v715 = vadd.f32 %v186, %v714
    %716 = vmatprep.mubr.bf16.mxu0 %v102
    %717 = vmatmul.mubr.bf16.gmra.mxu0 %v101
    %v718 = vpop.f32.mrf.mxu0
    %v719 = vadd.f32 %v182, %v718
    %v720 = vpop.f32.mrf.mxu0
    %v721 = vadd.f32 %v186, %v720
    %v722 = vpop.f32.mrf.mxu0
    %v723 = vadd.f32 %v182, %v722
    %v724 = vpop.f32.mrf.mxu0
    %v725 = vadd.f32 %v186, %v724
    %726 = vmatprep.mubr.bf16.mxu0 %v104
    %727 = vmatmul.mubr.bf16.gmra.mxu0 %v103
    %v728 = vpop.f32.mrf.mxu0
    %v729 = vadd.f32 %v182, %v728
    %v730 = vpop.f32.mrf.mxu0
    %v731 = vadd.f32 %v186, %v730
    %v732 = vpop.f32.mrf.mxu0
    %v733 = vadd.f32 %v182, %v732
    %v734 = vpop.f32.mrf.mxu0
    %v735 = vadd.f32 %v186, %v734
    %736 = vdwg.mxu0
    %737 = vxpose.xlu0.b32.start [1/16] %v546, 128
    %738 = vxpose.xlu0.b32.cont [2/16] %v550, 128
    %739 = vxpose.xlu0.b32.cont [3/16] %v556, 128
    %740 = vxpose.xlu0.b32.cont [4/16] %v560, 128
    %741 = vxpose.xlu0.b32.cont [5/16] %v566, 128
    %742 = vxpose.xlu0.b32.cont [6/16] %v570, 128
    %743 = vxpose.xlu0.b32.cont [7/16] %v576, 128
    %744 = vxpose.xlu0.b32.cont [8/16] %v580, 128
    %745 = vxpose.xlu0.b32.cont [9/16] %v586, 128
    %746 = vxpose.xlu0.b32.cont [10/16] %v590, 128
    %747 = vxpose.xlu0.b32.cont [11/16] %v596, 128
    %748 = vxpose.xlu0.b32.cont [12/16] %v600, 128
    %749 = vxpose.xlu0.b32.cont [13/16] %v606, 128
    %750 = vxpose.xlu0.b32.cont [14/16] %v610, 128
    %751 = vxpose.xlu0.b32.cont [15/16] %v616, 128
    %752 = vxpose.xlu0.b32.end [16/16] %v620, 128
    %v753 = vpop.trf.xlu0
    %v754 = vpop.trf.xlu0
    %v755 = vpop.trf.xlu0
    %v756 = vpop.trf.xlu0
    %v757 = vpop.trf.xlu0
    %v758 = vpop.trf.xlu0
    %v759 = vpop.trf.xlu0
    %v760 = vpop.trf.xlu0
    %v761 = vpop.trf.xlu0
    %v762 = vpop.trf.xlu0
    %v763 = vpop.trf.xlu0
    %v764 = vpop.trf.xlu0
    %v765 = vpop.trf.xlu0
    %v766 = vpop.trf.xlu0
    %v767 = vpop.trf.xlu0
    %v768 = vpop.trf.xlu0
    %769 = vxpose.xlu0.b32.start [1/16] %v548, 128
    %770 = vxpose.xlu0.b32.cont [2/16] %v552, 128
    %771 = vxpose.xlu0.b32.cont [3/16] %v558, 128
    %772 = vxpose.xlu0.b32.cont [4/16] %v562, 128
    %773 = vxpose.xlu0.b32.cont [5/16] %v568, 128
    %774 = vxpose.xlu0.b32.cont [6/16] %v572, 128
    %775 = vxpose.xlu0.b32.cont [7/16] %v578, 128
    %776 = vxpose.xlu0.b32.cont [8/16] %v582, 128
    %777 = vxpose.xlu0.b32.cont [9/16] %v588, 128
    %778 = vxpose.xlu0.b32.cont [10/16] %v592, 128
    %779 = vxpose.xlu0.b32.cont [11/16] %v598, 128
    %780 = vxpose.xlu0.b32.cont [12/16] %v602, 128
    %781 = vxpose.xlu0.b32.cont [13/16] %v608, 128
    %782 = vxpose.xlu0.b32.cont [14/16] %v612, 128
    %783 = vxpose.xlu0.b32.cont [15/16] %v618, 128
    %784 = vxpose.xlu0.b32.end [16/16] %v622, 128
    %v785 = vpop.trf.xlu0
    %v786 = vpop.trf.xlu0
    %v787 = vpop.trf.xlu0
    %v788 = vpop.trf.xlu0
    %v789 = vpop.trf.xlu0
    %v790 = vpop.trf.xlu0
    %v791 = vpop.trf.xlu0
    %v792 = vpop.trf.xlu0
    %v793 = vpop.trf.xlu0
    %v794 = vpop.trf.xlu0
    %v795 = vpop.trf.xlu0
    %v796 = vpop.trf.xlu0
    %v797 = vpop.trf.xlu0
    %v798 = vpop.trf.xlu0
    %v799 = vpop.trf.xlu0
    %v800 = vpop.trf.xlu0
    %v801 = vpack.c.bf16 %v754, %v753
    %v802 = vpack.c.bf16 %v756, %v755
    %v803 = vpack.c.bf16 %v758, %v757
    %v804 = vpack.c.bf16 %v760, %v759
    %v805 = vpack.c.bf16 %v762, %v761
    %v806 = vpack.c.bf16 %v764, %v763
    %v807 = vpack.c.bf16 %v766, %v765
    %v808 = vpack.c.bf16 %v768, %v767
    %v809 = vpack.c.bf16 %v786, %v785
    %v810 = vpack.c.bf16 %v788, %v787
    %v811 = vpack.c.bf16 %v790, %v789
    %v812 = vpack.c.bf16 %v792, %v791
    %v813 = vpack.c.bf16 %v794, %v793
    %v814 = vpack.c.bf16 %v796, %v795
    %v815 = vpack.c.bf16 %v798, %v797
    %v816 = vpack.c.bf16 %v800, %v799
    %v833 = vunpack.c.l.b16 %v801
    %v834 = vunpack.c.h.b16 %v801
    %v835 = vunpack.c.l.b16 %v802
    %v836 = vunpack.c.h.b16 %v802
    %v837 = vunpack.c.l.b16 %v803
    %v838 = vunpack.c.h.b16 %v803
    %v839 = vunpack.c.l.b16 %v804
    %v840 = vunpack.c.h.b16 %v804
    %v841 = vunpack.c.l.b16 %v805
    %v842 = vunpack.c.h.b16 %v805
    %v843 = vunpack.c.l.b16 %v806
    %v844 = vunpack.c.h.b16 %v806
    %v845 = vunpack.c.l.b16 %v807
    %v846 = vunpack.c.h.b16 %v807
    %v847 = vunpack.c.l.b16 %v808
    %v848 = vunpack.c.h.b16 %v808
    %v849 = vunpack.c.l.b16 %v809
    %v850 = vunpack.c.h.b16 %v809
    %v851 = vunpack.c.l.b16 %v810
    %v852 = vunpack.c.h.b16 %v810
    %v853 = vunpack.c.l.b16 %v811
    %v854 = vunpack.c.h.b16 %v811
    %v855 = vunpack.c.l.b16 %v812
    %v856 = vunpack.c.h.b16 %v812
    %v857 = vunpack.c.l.b16 %v813
    %v858 = vunpack.c.h.b16 %v813
    %v859 = vunpack.c.l.b16 %v814
    %v860 = vunpack.c.h.b16 %v814
    %v861 = vunpack.c.l.b16 %v815
    %v862 = vunpack.c.h.b16 %v815
    %v863 = vunpack.c.l.b16 %v816
    %v864 = vunpack.c.h.b16 %v816
    %v865 = vpack.c.b16 %v833, %v833
    %v866 = vpack.c.b16 %v834, %v834
    %v867 = vpack.c.b16 %v835, %v835
    %v868 = vpack.c.b16 %v836, %v836
    %v869 = vpack.c.b16 %v837, %v837
    %v870 = vpack.c.b16 %v838, %v838
    %v871 = vpack.c.b16 %v839, %v839
    %v872 = vpack.c.b16 %v840, %v840
    %v873 = vpack.c.b16 %v841, %v841
    %v874 = vpack.c.b16 %v842, %v842
    %v875 = vpack.c.b16 %v843, %v843
    %v876 = vpack.c.b16 %v844, %v844
    %v877 = vpack.c.b16 %v845, %v845
    %v878 = vpack.c.b16 %v846, %v846
    %v879 = vpack.c.b16 %v847, %v847
    %v880 = vpack.c.b16 %v848, %v848
    %v881 = vpack.c.b16 %v849, %v849
    %v882 = vpack.c.b16 %v850, %v850
    %v883 = vpack.c.b16 %v851, %v851
    %v884 = vpack.c.b16 %v852, %v852
    %v885 = vpack.c.b16 %v853, %v853
    %v886 = vpack.c.b16 %v854, %v854
    %v887 = vpack.c.b16 %v855, %v855
    %v888 = vpack.c.b16 %v856, %v856
    %v889 = vpack.c.b16 %v857, %v857
    %v890 = vpack.c.b16 %v858, %v858
    %v891 = vpack.c.b16 %v859, %v859
    %v892 = vpack.c.b16 %v860, %v860
    %v893 = vpack.c.b16 %v861, %v861
    %v894 = vpack.c.b16 %v862, %v862
    %v895 = vpack.c.b16 %v863, %v863
    %v896 = vpack.c.b16 %v864, %v864
    %929 = vst [vmem:[#allocation8] sm:$0xf] %v865
    %930 = vst [vmem:[#allocation8 + $0x4] sm:$0xf] %v866
    %931 = vst [vmem:[#allocation8 + $0x8] sm:$0xf] %v867
    %932 = vst [vmem:[#allocation8 + $0xc] sm:$0xf] %v868
    %933 = vst [vmem:[#allocation8 + $0x10] sm:$0xf] %v869
    %934 = vst [vmem:[#allocation8 + $0x14] sm:$0xf] %v870
    %935 = vst [vmem:[#allocation8 + $0x18] sm:$0xf] %v871
    %936 = vst [vmem:[#allocation8 + $0x1c] sm:$0xf] %v872
    %937 = vst [vmem:[#allocation8 + $0x20] sm:$0xf] %v873
    %938 = vst [vmem:[#allocation8 + $0x24] sm:$0xf] %v874
    %939 = vst [vmem:[#allocation8 + $0x28] sm:$0xf] %v875
    %940 = vst [vmem:[#allocation8 + $0x2c] sm:$0xf] %v876
    %941 = vst [vmem:[#allocation8 + $0x30] sm:$0xf] %v877
    %942 = vst [vmem:[#allocation8 + $0x34] sm:$0xf] %v878
    %943 = vst [vmem:[#allocation8 + $0x38] sm:$0xf] %v879
    %944 = vst [vmem:[#allocation8 + $0x3c] sm:$0xf] %v880
    %945 = vst [vmem:[#allocation8 + $0x40] sm:$0xf] %v881
    %946 = vst [vmem:[#allocation8 + $0x44] sm:$0xf] %v882
    %947 = vst [vmem:[#allocation8 + $0x48] sm:$0xf] %v883
    %948 = vst [vmem:[#allocation8 + $0x4c] sm:$0xf] %v884
    %949 = vst [vmem:[#allocation8 + $0x50] sm:$0xf] %v885
    %950 = vst [vmem:[#allocation8 + $0x54] sm:$0xf] %v886
    %951 = vst [vmem:[#allocation8 + $0x58] sm:$0xf] %v887
    %952 = vst [vmem:[#allocation8 + $0x5c] sm:$0xf] %v888
    %953 = vst [vmem:[#allocation8 + $0x60] sm:$0xf] %v889
    %954 = vst [vmem:[#allocation8 + $0x64] sm:$0xf] %v890
    %955 = vst [vmem:[#allocation8 + $0x68] sm:$0xf] %v891
    %956 = vst [vmem:[#allocation8 + $0x6c] sm:$0xf] %v892
    %957 = vst [vmem:[#allocation8 + $0x70] sm:$0xf] %v893
    %958 = vst [vmem:[#allocation8 + $0x74] sm:$0xf] %v894
    %959 = vst [vmem:[#allocation8 + $0x78] sm:$0xf] %v895
    %960 = vst [vmem:[#allocation8 + $0x7c] sm:$0xf] %v896
    %v961 = vpack.c.bf16 %v663, %v659
    %v962 = vpack.c.bf16 %v665, %v661
    %v963 = vpack.c.bf16 %v673, %v669
    %v964 = vpack.c.bf16 %v675, %v671
    %v965 = vpack.c.bf16 %v683, %v679
    %v966 = vpack.c.bf16 %v685, %v681
    %v967 = vpack.c.bf16 %v693, %v689
    %v968 = vpack.c.bf16 %v695, %v691
    %v969 = vpack.c.bf16 %v703, %v699
    %v970 = vpack.c.bf16 %v705, %v701
    %v971 = vpack.c.bf16 %v713, %v709
    %v972 = vpack.c.bf16 %v715, %v711
    %v973 = vpack.c.bf16 %v723, %v719
    %v974 = vpack.c.bf16 %v725, %v721
    %v975 = vpack.c.bf16 %v733, %v729
    %v976 = vpack.c.bf16 %v735, %v731
    %v993 = vunpack.c.l.b16 %v961
    %v994 = vunpack.c.l.b16 %v962
    %v995 = vunpack.c.h.b16 %v961
    %v996 = vunpack.c.h.b16 %v962
    %v997 = vunpack.c.l.b16 %v963
    %v998 = vunpack.c.l.b16 %v964
    %v999 = vunpack.c.h.b16 %v963
    %v1000 = vunpack.c.h.b16 %v964
    %v1001 = vunpack.c.l.b16 %v965
    %v1002 = vunpack.c.l.b16 %v966
    %v1003 = vunpack.c.h.b16 %v965
    %v1004 = vunpack.c.h.b16 %v966
    %v1005 = vunpack.c.l.b16 %v967
    %v1006 = vunpack.c.l.b16 %v968
    %v1007 = vunpack.c.h.b16 %v967
    %v1008 = vunpack.c.h.b16 %v968
    %v1009 = vunpack.c.l.b16 %v969
    %v1010 = vunpack.c.l.b16 %v970
    %v1011 = vunpack.c.h.b16 %v969
    %v1012 = vunpack.c.h.b16 %v970
    %v1013 = vunpack.c.l.b16 %v971
    %v1014 = vunpack.c.l.b16 %v972
    %v1015 = vunpack.c.h.b16 %v971
    %v1016 = vunpack.c.h.b16 %v972
    %v1017 = vunpack.c.l.b16 %v973
    %v1018 = vunpack.c.l.b16 %v974
    %v1019 = vunpack.c.h.b16 %v973
    %v1020 = vunpack.c.h.b16 %v974
    %v1021 = vunpack.c.l.b16 %v975
    %v1022 = vunpack.c.l.b16 %v976
    %v1023 = vunpack.c.h.b16 %v975
    %v1024 = vunpack.c.h.b16 %v976
    %v1025 = vpack.c.b16 %v994, %v993
    %v1026 = vpack.c.b16 %v996, %v995
    %v1027 = vpack.c.b16 %v998, %v997
    %v1028 = vpack.c.b16 %v1000, %v999
    %v1029 = vpack.c.b16 %v1002, %v1001
    %v1030 = vpack.c.b16 %v1004, %v1003
    %v1031 = vpack.c.b16 %v1006, %v1005
    %v1032 = vpack.c.b16 %v1008, %v1007
    %v1033 = vpack.c.b16 %v1010, %v1009
    %v1034 = vpack.c.b16 %v1012, %v1011
    %v1035 = vpack.c.b16 %v1014, %v1013
    %v1036 = vpack.c.b16 %v1016, %v1015
    %v1037 = vpack.c.b16 %v1018, %v1017
    %v1038 = vpack.c.b16 %v1020, %v1019
    %v1039 = vpack.c.b16 %v1022, %v1021
    %v1040 = vpack.c.b16 %v1024, %v1023
    %1057 = vst [vmem:[#allocation9] sm:$0xff] %v1025
    %1058 = vst [vmem:[#allocation9 + $0x8] sm:$0xff] %v1026
    %1059 = vst [vmem:[#allocation9 + $0x10] sm:$0xff] %v1027
    %1060 = vst [vmem:[#allocation9 + $0x18] sm:$0xff] %v1028
    %1061 = vst [vmem:[#allocation9 + $0x20] sm:$0xff] %v1029
    %1062 = vst [vmem:[#allocation9 + $0x28] sm:$0xff] %v1030
    %1063 = vst [vmem:[#allocation9 + $0x30] sm:$0xff] %v1031
    %1064 = vst [vmem:[#allocation9 + $0x38] sm:$0xff] %v1032
    %1065 = vst [vmem:[#allocation9 + $0x40] sm:$0xff] %v1033
    %1066 = vst [vmem:[#allocation9 + $0x48] sm:$0xff] %v1034
    %1067 = vst [vmem:[#allocation9 + $0x50] sm:$0xff] %v1035
    %1068 = vst [vmem:[#allocation9 + $0x58] sm:$0xff] %v1036
    %1069 = vst [vmem:[#allocation9 + $0x60] sm:$0xff] %v1037
    %1070 = vst [vmem:[#allocation9 + $0x68] sm:$0xff] %v1038
    %1071 = vst [vmem:[#allocation9 + $0x70] sm:$0xff] %v1039
    %1072 = vst [vmem:[#allocation9 + $0x78] sm:$0xff] %v1040
    // Predicated region
    $region26: #{tpu_custom_call.1} parent=1 // pred_check
      _
    $region27: #{tpu_custom_call.1} parent=1 // pred_check_branch
      %1074 = sbr.rel (0) target = $region29
    $region28: #{tpu_custom_call.1} parent=1 // pred_region
      %s1076 = ssub.s32 2048, 2048
      %1077 = vsyncadd [#allocation4], %s1076
      %s1078 = sshll.u32 [#allocation8], 4
      %s1079 = int_to_ptr.vmem [resolvable:$true] %s1078
      %1084 = dma.vmem_to_hbm [thread:$0]  %s1079, 2048, %s3, [#allocation4], 64, 64, 4
    $region29: #{tpu_custom_call.1} parent=1 // pred_fallthru
      _
    // Predicated region
    $region30: #{tpu_custom_call.1} parent=1 // pred_check
      _
    $region31: #{tpu_custom_call.1} parent=1 // pred_check_branch
      %1086 = sbr.rel (0) target = $region33
    $region32: #{tpu_custom_call.1} parent=1 // pred_region
      %s1088 = ssub.s32 2048, 2048
      %1089 = vsyncadd [#allocation10], %s1088
      %s1090 = sshll.u32 [#allocation9], 4
      %s1091 = int_to_ptr.vmem [resolvable:$true] %s1090
      %1096 = dma.vmem_to_hbm [thread:$0]  %s1091, 2048, %s4, [#allocation10], 128, 128, 8
    $region33: #{tpu_custom_call.1} parent=1 // pred_fallthru
      _
    // Predicated region
    $region34: #{tpu_custom_call.1} parent=1 // pred_check
      _
    $region35: #{tpu_custom_call.1} parent=1 // pred_check_branch
      %1098 = sbr.rel (0) target = $region37
    $region36: #{tpu_custom_call.1} parent=1 // pred_region
      %1099 = dma.done [#allocation4], 2048
    $region37: #{tpu_custom_call.1} parent=1 // pred_fallthru
      _
    // Predicated region
    $region38: #{tpu_custom_call.1} parent=1 // pred_check
      _
    $region39: #{tpu_custom_call.1} parent=1 // pred_check_branch
      %1101 = sbr.rel (0) target = $region41
    $region40: #{tpu_custom_call.1} parent=1 // pred_region
      %1102 = dma.done [#allocation10], 2048
    $region41: #{tpu_custom_call.1} parent=1 // pred_fallthru
      _
    %1103 = vsyncpa [#allocation3], 1
    %1104 = vsyncpa [#allocation6], 1
    %1105 = vsyncpa [#allocation4], 1
    %1106 = vsyncpa [#allocation10], 1

</llo_original>
